<compile_context>
chip_gen: v5e
topology: v5e:2x2
jax: 0.10.0
libtpu: 0.0.40
codegen_flags: <defaults>
</compile_context>

<pallas_src>
import functools
import math

import jax
import jax.numpy as jnp
from jax import lax
from jax.experimental import pallas as pl
from jax.experimental.pallas import tpu as pltpu


def _mha_kernel(*refs, num_heads, d_k, q_block, self_attn):
    if self_attn:
        x_ref, wqkv_ref, bqkv_ref, wo_ref, bo_ref, o_ref = refs
    else:
        q_ref, k_ref, v_ref, wqkv_ref, bqkv_ref, wo_ref, bo_ref, o_ref = refs

    d_model = num_heads * d_k
    f32 = jnp.float32
    scale = 1.0 / math.sqrt(d_k)

    # ---- Input projections (MXU matmuls, f32 accumulation) ----------------
    if self_attn:
        in_dtype = x_ref.dtype
        seq = x_ref.shape[1]
        n_q_tiles = seq // q_block
        x = x_ref[0]                                          # (seq, d_model)
        if n_q_tiles == 1:
            # Single fused QKV projection: one MXU pass over x, one input DMA.
            qkv = jnp.dot(x, wqkv_ref[...],
                          preferred_element_type=f32) + bqkv_ref[...]
            q = qkv[:, :d_model]
            k = qkv[:, d_model:2 * d_model]
            v = qkv[:, 2 * d_model:]
        else:
            # Q projection only needs this tile's rows; K/V need the full
            # sequence (still fused into one (d_model, 2*d_model) matmul).
            row0 = pl.multiple_of(pl.program_id(1) * q_block, q_block)
            xq = x_ref[0, pl.ds(row0, q_block), :]            # (q_block, d)
            q = (jnp.dot(xq, wqkv_ref[:, :d_model], preferred_element_type=f32)
                 + bqkv_ref[:, :d_model])
            kv = (jnp.dot(x, wqkv_ref[:, d_model:], preferred_element_type=f32)
                  + bqkv_ref[:, d_model:])
            k = kv[:, :d_model]
            v = kv[:, d_model:]
    else:
        in_dtype = q_ref.dtype
        q = (jnp.dot(q_ref[0], wqkv_ref[:, :d_model], preferred_element_type=f32)
             + bqkv_ref[:, :d_model])
        k = (jnp.dot(k_ref[0], wqkv_ref[:, d_model:2 * d_model],
                     preferred_element_type=f32)
             + bqkv_ref[:, d_model:2 * d_model])
        v = (jnp.dot(v_ref[0], wqkv_ref[:, 2 * d_model:],
                     preferred_element_type=f32)
             + bqkv_ref[:, 2 * d_model:])

    # Fold 1/sqrt(d_k) into Q once; cast MXU operands down to the input dtype
    # (no-op for f32, native rate for bf16). Accumulation stays in f32.
    q = (q * scale).astype(in_dtype)
    k = k.astype(in_dtype)
    v = v.astype(in_dtype)

    tq = q.shape[0]
    acc = jnp.zeros((tq, d_model), f32)
    for i in range(num_heads):
        lo = i * d_k
        qh = q[:, lo:lo + d_k]                                # (tq,  d_k)
        kh = k[:, lo:lo + d_k]                                # (seq, d_k)
        vh = v[:, lo:lo + d_k]                                # (seq, d_k)

        # Scores: contract the last dims of both operands directly
        # (no explicit kh.T -> no XLU transpose per head).
        s = lax.dot_general(qh, kh, (((1,), (1,)), ((), ())),
                            preferred_element_type=f32)       # (tq, seq)
        # TODO(synk): optional attention mask (masked_fill with -1e9) not
        # wired in; the module default is mask=None.
        s = s - jnp.max(s, axis=-1, keepdims=True)
        p = jnp.exp(s)
        # 1/denom on the EUP instead of an fdiv over the (tq, seq) tile.
        inv = pl.reciprocal(jnp.sum(p, axis=-1, keepdims=True), approx=True)
        # TODO(synk): dropout on p_attn is a no-op in eval mode; not implemented.
        hctx = jnp.dot(p.astype(in_dtype), vh,
                       preferred_element_type=f32) * inv      # (tq, d_k)
        # Per-head output-projection accumulation (no lane-dim concat):
        #   concat_h(ctx_h) @ Wo == sum_h ctx_h @ Wo[h*d_k:(h+1)*d_k, :]
        acc = acc + jnp.dot(hctx.astype(wo_ref.dtype), wo_ref[lo:lo + d_k, :],
                            preferred_element_type=f32)

    o_ref[0, :, :] = (acc + bo_ref[...]).astype(o_ref.dtype)


def multi_headed_attention(q, k, v, wq, bq, wk, bk, wv, bv, wo, bo, *,
                           num_heads, q_block=None):
    """q, k, v: (batch, seq, d_model). Weights pre-transposed to (in, out).

    Returns (batch, seq, d_model). When q/k/v are the same array object
    (self-attention, the BERT4NILM usage) the QKV projection is fused into a
    single matmul and the input is DMA'd once per grid step.
    """
    batch, seq, d_model = q.shape
    assert d_model % num_heads == 0
    d_k = d_model // num_heads
    self_attn = (q is k) and (k is v)

    if q_block is None:
        q_block = seq
        for cand in (512, 256, 128):
            if seq % cand == 0:
                q_block = cand
                break
    q_block = min(q_block, seq)
    assert seq % q_block == 0, "seq must be divisible by q_block"
    n_q_tiles = seq // q_block

    # Host-side fusion of the three projection weights / biases.
    wqkv = jnp.concatenate([wq, wk, wv], axis=1)              # (d, 3d)
    bqkv = jnp.concatenate([bq, bk, bv]).reshape(1, 3 * d_model)
    bo2 = bo.reshape(1, d_model)

    wqkv_spec = pl.BlockSpec((d_model, 3 * d_model), lambda b, t: (0, 0))
    bqkv_spec = pl.BlockSpec((1, 3 * d_model), lambda b, t: (0, 0))
    wo_spec = pl.BlockSpec((d_model, d_model), lambda b, t: (0, 0))
    bo_spec = pl.BlockSpec((1, d_model), lambda b, t: (0, 0))
    full_spec = pl.BlockSpec((1, seq, d_model), lambda b, t: (b, 0, 0))
    tile_spec = pl.BlockSpec((1, q_block, d_model), lambda b, t: (b, t, 0))

    if self_attn:
        in_specs = [full_spec, wqkv_spec, bqkv_spec, wo_spec, bo_spec]
        operands = (q, wqkv, bqkv, wo, bo2)
        n_x_inputs = 1
    else:
        in_specs = [tile_spec, full_spec, full_spec,
                    wqkv_spec, bqkv_spec, wo_spec, bo_spec]
        operands = (q, k, v, wqkv, bqkv, wo, bo2)
        n_x_inputs = 3

    kernel = functools.partial(_mha_kernel, num_heads=num_heads, d_k=d_k,
                               q_block=q_block, self_attn=self_attn)

    # Advisory cost estimate for XLA's scheduler.
    flops = int(batch * (8 * seq * d_model * d_model + 4 * seq * seq * d_model))
    transcendentals = int(batch * num_heads * seq * seq)
    bytes_accessed = int(
        (n_x_inputs + 1) * batch * seq * d_model * q.dtype.itemsize
        + (4 * d_model * d_model + 4 * d_model) * wq.dtype.itemsize)

    # Per-step VMEM footprint (weights/biases are double-buffered by the
    # pipeline even with constant index maps; budget for it explicitly).
    in_item = q.dtype.itemsize
    w_item = wq.dtype.itemsize
    weight_bytes = 2 * (4 * d_model * d_model + 4 * d_model) * w_item
    in_tile_elems = seq * d_model if self_attn else (q_block + 2 * seq) * d_model
    io_bytes = 2 * (in_tile_elems + q_block * d_model) * in_item
    work_bytes = 4 * (3 * seq * d_model            # f32 projected Q/K/V
                      + 3 * seq * d_model          # cast copies / temporaries
                      + 2 * q_block * seq          # scores + probs (f32)
                      + 2 * q_block * d_model)     # acc + per-head context
    vmem_est = weight_bytes + io_bytes + work_bytes
    vmem_limit = int(min(64 * 2 ** 20, max(32 * 2 ** 20, 2 * vmem_est)))

    return pl.pallas_call(
        kernel,
        out_shape=jax.ShapeDtypeStruct((batch, seq, d_model), q.dtype),
        grid_spec=pltpu.PrefetchScalarGridSpec(
            num_scalar_prefetch=0,
            grid=(batch, n_q_tiles),
            in_specs=in_specs,
            out_specs=tile_spec,
        ),
        compiler_params=pltpu.CompilerParams(
            dimension_semantics=("parallel", "parallel"),
            vmem_limit_bytes=vmem_limit),
        cost_estimate=pl.CostEstimate(flops=flops,
                                      transcendentals=transcendentals,
                                      bytes_accessed=bytes_accessed),
    )(*operands)


def _reference(q, k, v, wq, bq, wk, bk, wv, bv, wo, bo, num_heads):
    batch, seq, d_model = q.shape
    d_k = d_model // num_heads
    scale = 1.0 / math.sqrt(d_k)

    def proj(x, w, b):
        y = jnp.einsum("bsd,de->bse", x, w) + b
        return y.reshape(batch, seq, num_heads, d_k).transpose(0, 2, 1, 3)

    Q, K, V = proj(q, wq, bq), proj(k, wk, bk), proj(v, wv, bv)
    s = jnp.einsum("bhqd,bhkd->bhqk", Q, K) * scale
    p = jax.nn.softmax(s, axis=-1)
    ctx = jnp.einsum("bhqk,bhkd->bhqd", p, V)
    ctx = ctx.transpose(0, 2, 1, 3).reshape(batch, seq, d_model)
    return jnp.einsum("bsd,de->bse", ctx, wo) + bo


if __name__ == "__main__":
    # Small shapes consistent with the module's forward: (batch, seq, d_model).
    # d_model=128 keeps head / weight slices lane-tile aligned; production
    # BERT4NILM sizes (d_model=256, seq~480) stay aligned the same way.
    batch, seq, d_model, h = 2, 16, 128, 4

    key = jax.random.PRNGKey(0)
    keys = jax.random.split(key, 11)

    x_in = jax.random.normal(keys[0], (batch, seq, d_model), jnp.float32)
    k_in = jax.random.normal(keys[1], (batch, seq, d_model), jnp.float32)
    v_in = jax.random.normal(keys[2], (batch, seq, d_model), jnp.float32)

    lim = 1.0 / math.sqrt(d_model)

    def mk_linear(kw, kb):
        # nn.Linear params, stored pre-transposed (in, out) for row-major matmul.
        w = jax.random.uniform(kw, (d_model, d_model), jnp.float32, -lim, lim)
        b = jax.random.uniform(kb, (d_model,), jnp.float32, -lim, lim)
        return w, b

    wq, bq = mk_linear(keys[3], keys[4])
    wk, bk = mk_linear(keys[5], keys[6])
    wv, bv = mk_linear(keys[7], keys[8])
    wo, bo = mk_linear(keys[9], keys[10])

    params = (wq, bq, wk, bk, wv, bv, wo, bo)

    # 1) Self-attention (BERT4NILM usage): fused QKV projection, single q tile.
    out1 = jax.block_until_ready(
        multi_headed_attention(x_in, x_in, x_in, *params, num_heads=h))
    # 2) Self-attention with q-row tiling (2 tiles -> second parallel grid axis).
    out2 = jax.block_until_ready(
        multi_headed_attention(x_in, x_in, x_in, *params, num_heads=h, q_block=8))
    # 3) General (distinct q / k / v) path.
    out3 = jax.block_until_ready(
        multi_headed_attention(x_in, k_in, v_in, *params, num_heads=h))

    ref_self = _reference(x_in, x_in, x_in, *params, num_heads=h)
    ref_gen = _reference(x_in, k_in, v_in, *params, num_heads=h)

    # Tolerance accounts for the approx=True EUP reciprocal in the softmax.
    tol = dict(atol=1e-2, rtol=1e-2)
    assert out1.shape == (batch, seq, d_model)
    assert jnp.allclose(out1, ref_self, **tol), "self-attn (fused) mismatch"
    assert jnp.allclose(out2, ref_self, **tol), "self-attn (q-tiled) mismatch"
    assert jnp.allclose(out3, ref_gen, **tol), "general q/k/v mismatch"

    print("KERNEL_OK")
</pallas_src>

<mosaic_0001>
module attributes {stable_mosaic.version = 11 : i64} {
  func.func @_mha_kernel(%arg0: i32, %arg1: i32, %arg2: memref<1x16x128xf32, #tpu.memory_space<vmem>>, %arg3: memref<128x384xf32, #tpu.memory_space<vmem>>, %arg4: memref<1x384xf32, #tpu.memory_space<vmem>>, %arg5: memref<128x128xf32, #tpu.memory_space<vmem>>, %arg6: memref<1x128xf32, #tpu.memory_space<vmem>>, %arg7: memref<1x16x128xf32, #tpu.memory_space<vmem>>) attributes {dimension_semantics = [#tpu.dimension_semantics<parallel>, #tpu.dimension_semantics<parallel>], iteration_bounds = array<i64: 2, 1>, scalar_prefetch = 0 : i64, scratch_operands = 0 : i64, tpu.core_type = #tpu.core_type<tc>, window_params = [{transform_indices = @transform_0, window_bounds = array<i64: 1, 16, 128>}, {pipeline_mode = #tpu.pipeline_mode<synchronous>, transform_indices = @transform_1, window_bounds = array<i64: 128, 384>}, {pipeline_mode = #tpu.pipeline_mode<synchronous>, transform_indices = @transform_2, window_bounds = array<i64: 1, 384>}, {pipeline_mode = #tpu.pipeline_mode<synchronous>, transform_indices = @transform_3, window_bounds = array<i64: 128, 128>}, {pipeline_mode = #tpu.pipeline_mode<synchronous>, transform_indices = @transform_4, window_bounds = array<i64: 1, 128>}, {transform_indices = @transform_5, window_bounds = array<i64: 1, 16, 128>}]} {
    %c0 = arith.constant 0 : index
    %c0_0 = arith.constant 0 : index
    %c0_1 = arith.constant 0 : index
    %0 = vector.load %arg2[%c0, %c0_0, %c0_1] : memref<1x16x128xf32, #tpu.memory_space<vmem>>, vector<1x16x128xf32>
    %1 = vector.shape_cast %0 : vector<1x16x128xf32> to vector<16x128xf32>
    %c0_2 = arith.constant 0 : index
    %c0_3 = arith.constant 0 : index
    %2 = vector.load %arg3[%c0_2, %c0_3] : memref<128x384xf32, #tpu.memory_space<vmem>>, vector<128x384xf32>
    %cst = arith.constant dense<0.000000e+00> : vector<16x384xf32>
    %3 = tpu.matmul %1, %2, %cst {dimension_numbers = #tpu.dot_dimension_numbers<[1], [0], [0], [1], [0, 0, 1, 1], [], []>} : vector<16x128xf32>, vector<128x384xf32>, vector<16x384xf32> -> vector<16x384xf32>
    %c0_4 = arith.constant 0 : index
    %c0_5 = arith.constant 0 : index
    %4 = vector.load %arg4[%c0_4, %c0_5] : memref<1x384xf32, #tpu.memory_space<vmem>>, vector<1x384xf32>
    %5 = vector.broadcast %4 : vector<1x384xf32> to vector<16x384xf32>
    %6 = arith.addf %3, %5 : vector<16x384xf32>
    %7 = vector.extract_strided_slice %6 {offsets = [0, 0], sizes = [16, 128], strides = [1, 1]} : vector<16x384xf32> to vector<16x128xf32>
    %8 = vector.extract_strided_slice %6 {offsets = [0, 128], sizes = [16, 128], strides = [1, 1]} : vector<16x384xf32> to vector<16x128xf32>
    %9 = vector.extract_strided_slice %6 {offsets = [0, 256], sizes = [16, 128], strides = [1, 1]} : vector<16x384xf32> to vector<16x128xf32>
    %cst_6 = arith.constant 0.176776692 : f32
    %10 = vector.broadcast %cst_6 : f32 to vector<16x128xf32>
    %11 = arith.mulf %7, %10 : vector<16x128xf32>
    %cst_7 = arith.constant 0.000000e+00 : f32
    %12 = vector.broadcast %cst_7 : f32 to vector<16x128xf32>
    %13 = vector.extract_strided_slice %11 {offsets = [0, 0], sizes = [16, 32], strides = [1, 1]} : vector<16x128xf32> to vector<16x32xf32>
    %14 = vector.extract_strided_slice %8 {offsets = [0, 0], sizes = [16, 32], strides = [1, 1]} : vector<16x128xf32> to vector<16x32xf32>
    %15 = vector.extract_strided_slice %9 {offsets = [0, 0], sizes = [16, 32], strides = [1, 1]} : vector<16x128xf32> to vector<16x32xf32>
    %cst_8 = arith.constant dense<0.000000e+00> : vector<16x16xf32>
    %16 = tpu.matmul %13, %14, %cst_8 {dimension_numbers = #tpu.dot_dimension_numbers<[1], [1], [0], [0], [0, 0, 1, 0], [], []>} : vector<16x32xf32>, vector<16x32xf32>, vector<16x16xf32> -> vector<16x16xf32>
    %cst_9 = arith.constant dense<0xFF800000> : vector<16xf32>
    %17 = vector.multi_reduction <maximumf>, %16, %cst_9 [1] : vector<16x16xf32> to vector<16xf32>
    %18 = vector.shape_cast %17 : vector<16xf32> to vector<16x1xf32>
    %19 = vector.broadcast %18 : vector<16x1xf32> to vector<16x16xf32>
    %20 = arith.subf %16, %19 : vector<16x16xf32>
    %21 = math.exp %20 : vector<16x16xf32>
    %cst_10 = arith.constant dense<0.000000e+00> : vector<16xf32>
    %22 = vector.multi_reduction <add>, %21, %cst_10 [1] : vector<16x16xf32> to vector<16xf32>
    %23 = vector.shape_cast %22 : vector<16xf32> to vector<16x1xf32>
    %24 = tpu.reciprocal %23 {approx = true} : vector<16x1xf32> -> vector<16x1xf32>
    %cst_11 = arith.constant dense<0.000000e+00> : vector<16x32xf32>
    %25 = tpu.matmul %21, %15, %cst_11 {dimension_numbers = #tpu.dot_dimension_numbers<[1], [0], [0], [1], [0, 0, 1, 1], [], []>} : vector<16x16xf32>, vector<16x32xf32>, vector<16x32xf32> -> vector<16x32xf32>
    %26 = vector.broadcast %24 : vector<16x1xf32> to vector<16x32xf32>
    %27 = arith.mulf %25, %26 : vector<16x32xf32>
    %c0_12 = arith.constant 0 : index
    %c0_13 = arith.constant 0 : index
    %28 = vector.load %arg5[%c0_12, %c0_13] : memref<128x128xf32, #tpu.memory_space<vmem>>, vector<32x128xf32>
    %cst_14 = arith.constant dense<0.000000e+00> : vector<16x128xf32>
    %29 = tpu.matmul %27, %28, %cst_14 {dimension_numbers = #tpu.dot_dimension_numbers<[1], [0], [0], [1], [0, 0, 1, 1], [], []>} : vector<16x32xf32>, vector<32x128xf32>, vector<16x128xf32> -> vector<16x128xf32>
    %30 = arith.addf %12, %29 : vector<16x128xf32>
    %31 = vector.extract_strided_slice %11 {offsets = [0, 32], sizes = [16, 32], strides = [1, 1]} : vector<16x128xf32> to vector<16x32xf32>
    %32 = vector.extract_strided_slice %8 {offsets = [0, 32], sizes = [16, 32], strides = [1, 1]} : vector<16x128xf32> to vector<16x32xf32>
    %33 = vector.extract_strided_slice %9 {offsets = [0, 32], sizes = [16, 32], strides = [1, 1]} : vector<16x128xf32> to vector<16x32xf32>
    %cst_15 = arith.constant dense<0.000000e+00> : vector<16x16xf32>
    %34 = tpu.matmul %31, %32, %cst_15 {dimension_numbers = #tpu.dot_dimension_numbers<[1], [1], [0], [0], [0, 0, 1, 0], [], []>} : vector<16x32xf32>, vector<16x32xf32>, vector<16x16xf32> -> vector<16x16xf32>
    %cst_16 = arith.constant dense<0xFF800000> : vector<16xf32>
    %35 = vector.multi_reduction <maximumf>, %34, %cst_16 [1] : vector<16x16xf32> to vector<16xf32>
    %36 = vector.shape_cast %35 : vector<16xf32> to vector<16x1xf32>
    %37 = vector.broadcast %36 : vector<16x1xf32> to vector<16x16xf32>
    %38 = arith.subf %34, %37 : vector<16x16xf32>
    %39 = math.exp %38 : vector<16x16xf32>
    %cst_17 = arith.constant dense<0.000000e+00> : vector<16xf32>
    %40 = vector.multi_reduction <add>, %39, %cst_17 [1] : vector<16x16xf32> to vector<16xf32>
    %41 = vector.shape_cast %40 : vector<16xf32> to vector<16x1xf32>
    %42 = tpu.reciprocal %41 {approx = true} : vector<16x1xf32> -> vector<16x1xf32>
    %cst_18 = arith.constant dense<0.000000e+00> : vector<16x32xf32>
    %43 = tpu.matmul %39, %33, %cst_18 {dimension_numbers = #tpu.dot_dimension_numbers<[1], [0], [0], [1], [0, 0, 1, 1], [], []>} : vector<16x16xf32>, vector<16x32xf32>, vector<16x32xf32> -> vector<16x32xf32>
    %44 = vector.broadcast %42 : vector<16x1xf32> to vector<16x32xf32>
    %45 = arith.mulf %43, %44 : vector<16x32xf32>
    %c32 = arith.constant 32 : index
    %c0_19 = arith.constant 0 : index
    %46 = vector.load %arg5[%c32, %c0_19] : memref<128x128xf32, #tpu.memory_space<vmem>>, vector<32x128xf32>
    %cst_20 = arith.constant dense<0.000000e+00> : vector<16x128xf32>
    %47 = tpu.matmul %45, %46, %cst_20 {dimension_numbers = #tpu.dot_dimension_numbers<[1], [0], [0], [1], [0, 0, 1, 1], [], []>} : vector<16x32xf32>, vector<32x128xf32>, vector<16x128xf32> -> vector<16x128xf32>
    %48 = arith.addf %30, %47 : vector<16x128xf32>
    %49 = vector.extract_strided_slice %11 {offsets = [0, 64], sizes = [16, 32], strides = [1, 1]} : vector<16x128xf32> to vector<16x32xf32>
    %50 = vector.extract_strided_slice %8 {offsets = [0, 64], sizes = [16, 32], strides = [1, 1]} : vector<16x128xf32> to vector<16x32xf32>
    %51 = vector.extract_strided_slice %9 {offsets = [0, 64], sizes = [16, 32], strides = [1, 1]} : vector<16x128xf32> to vector<16x32xf32>
    %cst_21 = arith.constant dense<0.000000e+00> : vector<16x16xf32>
    %52 = tpu.matmul %49, %50, %cst_21 {dimension_numbers = #tpu.dot_dimension_numbers<[1], [1], [0], [0], [0, 0, 1, 0], [], []>} : vector<16x32xf32>, vector<16x32xf32>, vector<16x16xf32> -> vector<16x16xf32>
    %cst_22 = arith.constant dense<0xFF800000> : vector<16xf32>
    %53 = vector.multi_reduction <maximumf>, %52, %cst_22 [1] : vector<16x16xf32> to vector<16xf32>
    %54 = vector.shape_cast %53 : vector<16xf32> to vector<16x1xf32>
    %55 = vector.broadcast %54 : vector<16x1xf32> to vector<16x16xf32>
    %56 = arith.subf %52, %55 : vector<16x16xf32>
    %57 = math.exp %56 : vector<16x16xf32>
    %cst_23 = arith.constant dense<0.000000e+00> : vector<16xf32>
    %58 = vector.multi_reduction <add>, %57, %cst_23 [1] : vector<16x16xf32> to vector<16xf32>
    %59 = vector.shape_cast %58 : vector<16xf32> to vector<16x1xf32>
    %60 = tpu.reciprocal %59 {approx = true} : vector<16x1xf32> -> vector<16x1xf32>
    %cst_24 = arith.constant dense<0.000000e+00> : vector<16x32xf32>
    %61 = tpu.matmul %57, %51, %cst_24 {dimension_numbers = #tpu.dot_dimension_numbers<[1], [0], [0], [1], [0, 0, 1, 1], [], []>} : vector<16x16xf32>, vector<16x32xf32>, vector<16x32xf32> -> vector<16x32xf32>
    %62 = vector.broadcast %60 : vector<16x1xf32> to vector<16x32xf32>
    %63 = arith.mulf %61, %62 : vector<16x32xf32>
    %c64 = arith.constant 64 : index
    %c0_25 = arith.constant 0 : index
    %64 = vector.load %arg5[%c64, %c0_25] : memref<128x128xf32, #tpu.memory_space<vmem>>, vector<32x128xf32>
    %cst_26 = arith.constant dense<0.000000e+00> : vector<16x128xf32>
    %65 = tpu.matmul %63, %64, %cst_26 {dimension_numbers = #tpu.dot_dimension_numbers<[1], [0], [0], [1], [0, 0, 1, 1], [], []>} : vector<16x32xf32>, vector<32x128xf32>, vector<16x128xf32> -> vector<16x128xf32>
    %66 = arith.addf %48, %65 : vector<16x128xf32>
    %67 = vector.extract_strided_slice %11 {offsets = [0, 96], sizes = [16, 32], strides = [1, 1]} : vector<16x128xf32> to vector<16x32xf32>
    %68 = vector.extract_strided_slice %8 {offsets = [0, 96], sizes = [16, 32], strides = [1, 1]} : vector<16x128xf32> to vector<16x32xf32>
    %69 = vector.extract_strided_slice %9 {offsets = [0, 96], sizes = [16, 32], strides = [1, 1]} : vector<16x128xf32> to vector<16x32xf32>
    %cst_27 = arith.constant dense<0.000000e+00> : vector<16x16xf32>
    %70 = tpu.matmul %67, %68, %cst_27 {dimension_numbers = #tpu.dot_dimension_numbers<[1], [1], [0], [0], [0, 0, 1, 0], [], []>} : vector<16x32xf32>, vector<16x32xf32>, vector<16x16xf32> -> vector<16x16xf32>
    %cst_28 = arith.constant dense<0xFF800000> : vector<16xf32>
    %71 = vector.multi_reduction <maximumf>, %70, %cst_28 [1] : vector<16x16xf32> to vector<16xf32>
    %72 = vector.shape_cast %71 : vector<16xf32> to vector<16x1xf32>
    %73 = vector.broadcast %72 : vector<16x1xf32> to vector<16x16xf32>
    %74 = arith.subf %70, %73 : vector<16x16xf32>
    %75 = math.exp %74 : vector<16x16xf32>
    %cst_29 = arith.constant dense<0.000000e+00> : vector<16xf32>
    %76 = vector.multi_reduction <add>, %75, %cst_29 [1] : vector<16x16xf32> to vector<16xf32>
    %77 = vector.shape_cast %76 : vector<16xf32> to vector<16x1xf32>
    %78 = tpu.reciprocal %77 {approx = true} : vector<16x1xf32> -> vector<16x1xf32>
    %cst_30 = arith.constant dense<0.000000e+00> : vector<16x32xf32>
    %79 = tpu.matmul %75, %69, %cst_30 {dimension_numbers = #tpu.dot_dimension_numbers<[1], [0], [0], [1], [0, 0, 1, 1], [], []>} : vector<16x16xf32>, vector<16x32xf32>, vector<16x32xf32> -> vector<16x32xf32>
    %80 = vector.broadcast %78 : vector<16x1xf32> to vector<16x32xf32>
    %81 = arith.mulf %79, %80 : vector<16x32xf32>
    %c96 = arith.constant 96 : index
    %c0_31 = arith.constant 0 : index
    %82 = vector.load %arg5[%c96, %c0_31] : memref<128x128xf32, #tpu.memory_space<vmem>>, vector<32x128xf32>
    %cst_32 = arith.constant dense<0.000000e+00> : vector<16x128xf32>
    %83 = tpu.matmul %81, %82, %cst_32 {dimension_numbers = #tpu.dot_dimension_numbers<[1], [0], [0], [1], [0, 0, 1, 1], [], []>} : vector<16x32xf32>, vector<32x128xf32>, vector<16x128xf32> -> vector<16x128xf32>
    %84 = arith.addf %66, %83 : vector<16x128xf32>
    %c0_33 = arith.constant 0 : index
    %c0_34 = arith.constant 0 : index
    %85 = vector.load %arg6[%c0_33, %c0_34] : memref<1x128xf32, #tpu.memory_space<vmem>>, vector<1x128xf32>
    %86 = vector.broadcast %85 : vector<1x128xf32> to vector<16x128xf32>
    %87 = arith.addf %84, %86 : vector<16x128xf32>
    %c0_35 = arith.constant 0 : index
    %c0_36 = arith.constant 0 : index
    %c0_37 = arith.constant 0 : index
    %88 = vector.load %arg7[%c0_35, %c0_36, %c0_37] : memref<1x16x128xf32, #tpu.memory_space<vmem>>, vector<1x16x128xf32>
    %89 = vector.shape_cast %88 : vector<1x16x128xf32> to vector<16x128xf32>
    %90 = vector.shape_cast %87 : vector<16x128xf32> to vector<1x16x128xf32>
    tpu.vector_store %arg7[%c0_35, %c0_36, %c0_37], %90 {strides = array<i32>} : memref<1x16x128xf32, #tpu.memory_space<vmem>>, vector<1x16x128xf32>,
    return
  }
  func.func @transform_0(%arg0: i32, %arg1: i32) -> (i32, i32, i32) {
    %c0_i32 = arith.constant 0 : i32
    %c0_i32_0 = arith.constant 0 : i32
    %c0_i32_1 = arith.constant 0 : i32
    return %arg0, %c0_i32, %c0_i32_0 : i32, i32, i32
  }
  func.func @transform_1(%arg0: i32, %arg1: i32) -> (i32, i32) {
    %c0_i32 = arith.constant 0 : i32
    %c0_i32_0 = arith.constant 0 : i32
    %c0_i32_1 = arith.constant 0 : i32
    return %c0_i32, %c0_i32_0 : i32, i32
  }
  func.func @transform_2(%arg0: i32, %arg1: i32) -> (i32, i32) {
    %c0_i32 = arith.constant 0 : i32
    %c0_i32_0 = arith.constant 0 : i32
    %c0_i32_1 = arith.constant 0 : i32
    return %c0_i32, %c0_i32_0 : i32, i32
  }
  func.func @transform_3(%arg0: i32, %arg1: i32) -> (i32, i32) {
    %c0_i32 = arith.constant 0 : i32
    %c0_i32_0 = arith.constant 0 : i32
    %c0_i32_1 = arith.constant 0 : i32
    return %c0_i32, %c0_i32_0 : i32, i32
  }
  func.func @transform_4(%arg0: i32, %arg1: i32) -> (i32, i32) {
    %c0_i32 = arith.constant 0 : i32
    %c0_i32_0 = arith.constant 0 : i32
    %c0_i32_1 = arith.constant 0 : i32
    return %c0_i32, %c0_i32_0 : i32, i32
  }
  func.func @transform_5(%arg0: i32, %arg1: i32) -> (i32, i32, i32) {
    %c0_i32 = arith.constant 0 : i32
    %c0_i32_0 = arith.constant 0 : i32
    return %arg0, %arg1, %c0_i32 : i32, i32, i32
  }
}

</mosaic_0001>

<llo_original>
// kernel: tpu_custom_call.1
$region0: #{tpu_custom_call.1}
  #allocation0 [shape = 'u32[]', space=smem, size = 0x4, offset = 0x4, fixed_abs, tag = 'smem constant byte address 0x4 - core index']
  #allocation1 [shape = 'u32[72,128]{1,0:T(1,128)}', space=vmem, size = 0x9000, scoped, tag = 'internal scratch']
  %s0 = inlined_call_operand.hbm [shape: f32[2,16,128], index: 0, kind: input, shape index: {}]
  %s1 = inlined_call_operand.hbm [shape: f32[128,384], index: 1, kind: input, shape index: {}]
  %s2 = inlined_call_operand.hbm [shape: f32[1,384], index: 2, kind: input, shape index: {}]
  %s3 = inlined_call_operand.hbm [shape: f32[128,128], index: 3, kind: input, shape index: {}]
  %s4 = inlined_call_operand.vmem [shape: f32[1,128], index: 4, kind: input, shape index: {}]
  %s5 = inlined_call_operand.hbm [shape: f32[2,16,128], index: 5, kind: output, shape index: {}]
  %s6 = sld [smem:[#allocation0]]
  $region69: #{tpu_custom_call.1} parent=0
    _
  %s8 = ssub.s32 1, %s6
  %s9 = scalar_select 0, %s8, %s6
  $region1: #{tpu_custom_call.1} parent=0
    #allocation2 [shape = 'u8[16384]{0}', space=vmem, size = 0x4000, scoped, tag = 'input window, operand 0']
    #allocation3 [shape = 's32[2]{0}', space=sflag, size = 0x8, scoped, tag = 'scoped memory for tpu_custom_call.1']
    #allocation4 [shape = 's32[2]{0}', space=sflag, size = 0x8, scoped, tag = 'scoped memory for tpu_custom_call.1']
    #allocation5 [shape = 'u8[196608]{0}', space=vmem, size = 0x30000, scoped, tag = 'input window, operand 1, single buffered']
    #allocation6 [shape = 's32[1]{0}', space=sflag, size = 0x4, scoped, tag = 'scoped memory for tpu_custom_call.1']
    #allocation7 [shape = 'u8[1536]{0}', space=vmem, size = 0x800, scoped, tag = 'input window, operand 2, single buffered']
    #allocation8 [shape = 'u8[65536]{0}', space=vmem, size = 0x10000, scoped, tag = 'input window, operand 3, single buffered']
    #allocation9 [shape = 's32[1]{0}', space=sflag, size = 0x4, scoped, tag = 'scoped memory for tpu_custom_call.1']
    #allocation10 [shape = 'u8[16384]{0}', space=vmem, size = 0x4000, scoped, tag = 'output window, operand 0']
    %10 = vsyncpa [#allocation3], 0
    %s11 = scalar_lea.sflag [#allocation3], 1
    %12 = vsyncpa %s11, 0
    %13 = vsyncpa [#allocation6], 0
    %14 = vsyncpa [#allocation9], 0
    %15 = vsyncpa [#allocation4], 0
    %s16 = scalar_lea.sflag [#allocation4], 1
    %17 = vsyncpa %s16, 0
    loop: start=0, step=1, limit=4
    $region2: #{tpu_custom_call.1} parent=1 // loop_pre_header
      _
    $region3: #{tpu_custom_call.1} parent=1 // loop_header
      %s19 = sphi 0, %s23
      %p20 = scmp.ge.s32.totalorder %s19, 4
      %s26 = sphi 0, %s38
      %s27 = sphi 0, %s34
      %s28 = sphi 0, %s26
      %s29 = sphi 0, %s27
      %s30 = sphi 0, %s28
      %s31 = sphi 0, %s29
      %s41 = sphi 0, %s43
      %s44 = sphi 0, %s41
      %s45 = sphi 0, %s44
      %s61 = sphi 0, %s45
      %s65 = sphi 0, %s65
      %s67 = sphi 0, %s65
      %s68 = sphi 0, %s67
      %s82 = sphi 0, %s68
      %s86 = sphi 0, %s86
      %s88 = sphi 0, %s86
      %s89 = sphi 0, %s88
      %s103 = sphi 0, %s89
      %s107 = sphi 0, %s107
      %s109 = sphi 0, %s107
      %s110 = sphi 0, %s109
      %s124 = sphi 0, %s110
      %s128 = sphi 0, %s128
      %s130 = sphi 0, %s128
      %s131 = sphi 0, %s130
      %s145 = sphi 0, %s131
      %s153 = sphi 0, %s155
      %s156 = sphi 0, %s153
      %s157 = sphi 0, %s156
      %s173 = sphi 0, %s157
    $region4: #{tpu_custom_call.1} parent=1 // loop_header_branch
      %22 = sbr.rel (%p20) target = $region8
    $region5: #{tpu_custom_call.1} parent=1 // loop_body
      %s24 = ssub.s32 %s19, 1
      %s25 = ssub.s32 %s19, 2
      %s32 = sadd.s32 1, %s27
      %p33 = scmp.ge.s32.totalorder %s32, 1
      %s34 = scalar_select %p33, 0, %s32
      %s35 = sadd.s32 1, %s26
      %s36 = scalar_select %p33, %s35, %s26
      %p37 = scmp.ge.s32.totalorder %s36, 2
      %s38 = scalar_select %p37, 0, %s36
      %s39 = ssub.s32 %s26, %s38
      %p40 = scmp.eq.s32.totalorder %s39, 0
      %s42 = sadd.s32 %s41, 1
      %s43 = scalar_select %p40, %s41, %s42
      %p46 = pneg %p40
      %p47 = scmp.eq.s32.totalorder %s19, 1
      %p48 = por %p46, %p47
      %p49 = scmp.ne.s32.totalorder %s41, %s44
      %p50 = scmp.eq.s32.totalorder %s19, 0
      %p51 = por %p49, %p50
      %p52 = scmp.ne.s32.totalorder %s41, %s44
      %p53 = scmp.eq.s32.totalorder %s24, 1
      %p54 = por %p52, %p53
      %p55 = scmp.ne.s32.totalorder %s44, %s45
      %p56 = scmp.eq.s32.totalorder %s24, 0
      %p57 = por %p55, %p56
      %p58 = scmp.ne.s32.totalorder %s44, %s45
      %p59 = scmp.eq.s32.totalorder %s25, 1
      %p60 = por %p58, %p59
      %p62 = scmp.ne.s32.totalorder %s45, %s61
      %p63 = scmp.eq.s32.totalorder %s25, 0
      %p64 = por %p62, %p63
      %s66 = sadd.s32 %s65, 1
      %p69 = scmp.eq.s32.totalorder %s19, 1
      %p70 = scmp.ne.s32.totalorder %s65, %s67
      %p71 = scmp.eq.s32.totalorder %s19, 0
      %p72 = por %p70, %p71
      %p73 = scmp.ne.s32.totalorder %s65, %s67
      %p74 = scmp.eq.s32.totalorder %s24, 1
      %p75 = por %p73, %p74
      %p76 = scmp.ne.s32.totalorder %s67, %s68
      %p77 = scmp.eq.s32.totalorder %s24, 0
      %p78 = por %p76, %p77
      %p79 = scmp.ne.s32.totalorder %s67, %s68
      %p80 = scmp.eq.s32.totalorder %s25, 1
      %p81 = por %p79, %p80
      %p83 = scmp.ne.s32.totalorder %s68, %s82
      %p84 = scmp.eq.s32.totalorder %s25, 0
      %p85 = por %p83, %p84
      %s87 = sadd.s32 %s86, 1
      %p90 = scmp.eq.s32.totalorder %s19, 1
      %p91 = scmp.ne.s32.totalorder %s86, %s88
      %p92 = scmp.eq.s32.totalorder %s19, 0
      %p93 = por %p91, %p92
      %p94 = scmp.ne.s32.totalorder %s86, %s88
      %p95 = scmp.eq.s32.totalorder %s24, 1
      %p96 = por %p94, %p95
      %p97 = scmp.ne.s32.totalorder %s88, %s89
      %p98 = scmp.eq.s32.totalorder %s24, 0
      %p99 = por %p97, %p98
      %p100 = scmp.ne.s32.totalorder %s88, %s89
      %p101 = scmp.eq.s32.totalorder %s25, 1
      %p102 = por %p100, %p101
      %p104 = scmp.ne.s32.totalorder %s89, %s103
      %p105 = scmp.eq.s32.totalorder %s25, 0
      %p106 = por %p104, %p105
      %s108 = sadd.s32 %s107, 1
      %p111 = scmp.eq.s32.totalorder %s19, 1
      %p112 = scmp.ne.s32.totalorder %s107, %s109
      %p113 = scmp.eq.s32.totalorder %s19, 0
      %p114 = por %p112, %p113
      %p115 = scmp.ne.s32.totalorder %s107, %s109
      %p116 = scmp.eq.s32.totalorder %s24, 1
      %p117 = por %p115, %p116
      %p118 = scmp.ne.s32.totalorder %s109, %s110
      %p119 = scmp.eq.s32.totalorder %s24, 0
      %p120 = por %p118, %p119
      %p121 = scmp.ne.s32.totalorder %s109, %s110
      %p122 = scmp.eq.s32.totalorder %s25, 1
      %p123 = por %p121, %p122
      %p125 = scmp.ne.s32.totalorder %s110, %s124
      %p126 = scmp.eq.s32.totalorder %s25, 0
      %p127 = por %p125, %p126
      %s129 = sadd.s32 %s128, 1
      %p132 = scmp.eq.s32.totalorder %s19, 1
      %p133 = scmp.ne.s32.totalorder %s128, %s130
      %p134 = scmp.eq.s32.totalorder %s19, 0
      %p135 = por %p133, %p134
      %p136 = scmp.ne.s32.totalorder %s128, %s130
      %p137 = scmp.eq.s32.totalorder %s24, 1
      %p138 = por %p136, %p137
      %p139 = scmp.ne.s32.totalorder %s130, %s131
      %p140 = scmp.eq.s32.totalorder %s24, 0
      %p141 = por %p139, %p140
      %p142 = scmp.ne.s32.totalorder %s130, %s131
      %p143 = scmp.eq.s32.totalorder %s25, 1
      %p144 = por %p142, %p143
      %p146 = scmp.ne.s32.totalorder %s131, %s145
      %p147 = scmp.eq.s32.totalorder %s25, 0
      %p148 = por %p146, %p147
      %s149 = ssub.s32 %s26, %s38
      %s150 = ssub.s32 %s27, %s34
      %s151 = sor.u32 %s149, %s150
      %p152 = scmp.eq.s32.totalorder %s151, 0
      %s154 = sadd.s32 %s153, 1
      %s155 = scalar_select %p152, %s153, %s154
      %p158 = pneg %p152
      %p159 = scmp.eq.s32.totalorder %s19, 1
      %p160 = por %p158, %p159
      %p161 = scmp.ne.s32.totalorder %s153, %s156
      %p162 = scmp.eq.s32.totalorder %s19, 0
      %p163 = por %p161, %p162
      %p164 = scmp.ne.s32.totalorder %s153, %s156
      %p165 = scmp.eq.s32.totalorder %s24, 1
      %p166 = por %p164, %p165
      %p167 = scmp.ne.s32.totalorder %s156, %s157
      %p168 = scmp.eq.s32.totalorder %s24, 0
      %p169 = por %p167, %p168
      %p170 = scmp.ne.s32.totalorder %s156, %s157
      %p171 = scmp.eq.s32.totalorder %s25, 1
      %p172 = por %p170, %p171
      %p174 = scmp.ne.s32.totalorder %s157, %s173
      %p175 = scmp.eq.s32.totalorder %s25, 0
      %p176 = por %p174, %p175
      %p177 = scmp.le.s32.totalorder 1, %s19
      %p178 = scmp.lt.s32.totalorder %s19, 3
      %p179 = pnand %p177, %p178
      %p180 = pneg %p179
      // Predicated region
      $region9: #{tpu_custom_call.1} parent=5 // pred_check
        _
      $region10: #{tpu_custom_call.1} parent=5 // pred_check_branch
        %182 = sbr.rel (%p179) target = $region12
      $region11: #{tpu_custom_call.1} parent=5 // pred_region
        %s183 = ssub.s32 %s19, 1
        // Predicated region
        $region13: #{tpu_custom_call.1} parent=11 // pred_check
          %p184 = pneg %p78
        $region14: #{tpu_custom_call.1} parent=11 // pred_check_branch
          %186 = sbr.rel (%p184) target = $region16
        $region15: #{tpu_custom_call.1} parent=11 // pred_region
          %188 = vsyncadd [#allocation6], 0
          %s189 = sshll.u32 %s1, 4
          %s190 = int_to_ptr.hbm [resolvable:$true] %s189
          %s191 = sshll.u32 [#allocation5], 4
          %s192 = int_to_ptr.vmem [resolvable:$true] %s191
          %197 = dma.hbm_to_vmem [thread:$0]  %s190, 6144, %s192, [#allocation6], 384, 384, 24
        $region16: #{tpu_custom_call.1} parent=11 // pred_fallthru
          _
        // Predicated region
        $region17: #{tpu_custom_call.1} parent=11 // pred_check
          %p198 = pneg %p99
        $region18: #{tpu_custom_call.1} parent=11 // pred_check_branch
          %200 = sbr.rel (%p198) target = $region20
        $region19: #{tpu_custom_call.1} parent=11 // pred_region
          %202 = vsyncadd [#allocation6], 0
          %s204 = sshll.u32 %s2, 4
          %s205 = int_to_ptr.hbm [resolvable:$true] %s204
          %s206 = sshll.u32 [#allocation7], 4
          %s207 = int_to_ptr.vmem [resolvable:$true] %s206
          %209 = dma.hbm_to_vmem [thread:$0]  %s205, 48, %s207, [#allocation6]
        $region20: #{tpu_custom_call.1} parent=11 // pred_fallthru
          _
        // Predicated region
        $region21: #{tpu_custom_call.1} parent=11 // pred_check
          %p210 = pneg %p120
        $region22: #{tpu_custom_call.1} parent=11 // pred_check_branch
          %212 = sbr.rel (%p210) target = $region24
        $region23: #{tpu_custom_call.1} parent=11 // pred_region
          %214 = vsyncadd [#allocation9], 0
          %s215 = sshll.u32 %s3, 4
          %s216 = int_to_ptr.hbm [resolvable:$true] %s215
          %s217 = sshll.u32 [#allocation8], 4
          %s218 = int_to_ptr.vmem [resolvable:$true] %s217
          %223 = dma.hbm_to_vmem [thread:$0]  %s216, 2048, %s218, [#allocation9], 128, 128, 8
        $region24: #{tpu_custom_call.1} parent=11 // pred_fallthru
          _
        // Predicated region
        $region25: #{tpu_custom_call.1} parent=11 // pred_check
          %p224 = pneg %p141
        $region26: #{tpu_custom_call.1} parent=11 // pred_check_branch
          %226 = sbr.rel (%p224) target = $region28
        $region27: #{tpu_custom_call.1} parent=11 // pred_region
          _
        $region28: #{tpu_custom_call.1} parent=11 // pred_fallthru
          _
      $region12: #{tpu_custom_call.1} parent=5 // pred_fallthru
        _
      %p227 = scmp.lt.s32.totalorder %s19, 2
      // Predicated region
      $region29: #{tpu_custom_call.1} parent=5 // pred_check
        %p228 = pneg %p227
      $region30: #{tpu_custom_call.1} parent=5 // pred_check_branch
        %230 = sbr.rel (%p228) target = $region32
      $region31: #{tpu_custom_call.1} parent=5 // pred_region
        // Predicated region
        $region33: #{tpu_custom_call.1} parent=31 // pred_check
          %p231 = pneg %p51
        $region34: #{tpu_custom_call.1} parent=31 // pred_check_branch
          %233 = sbr.rel (%p231) target = $region36
        $region35: #{tpu_custom_call.1} parent=31 // pred_region
          %s234 = sand.u32 %s41, 1
          %s235 = scalar_lea.sflag [#allocation3], %s234
          %s236 = sand.u32 %s41, 1
          %s237 = smul.addr %s236, 16
          %s238 = scalar_lea.vmem [#allocation2], %s237
          %240 = vsyncadd %s235, 0
          %s241 = smul.addr %s26, 2
          %s242 = smul.addr %s241, 8
          %s243 = scalar_lea.hbm %s0, %s242
          %s244 = sshll.u32 %s243, 4
          %s245 = int_to_ptr.hbm [resolvable:$true] %s244
          %s246 = sshll.u32 %s238, 4
          %s247 = int_to_ptr.vmem [resolvable:$true] %s246
          %252 = dma.hbm_to_vmem [thread:$0]  %s245, 256, %s247, %s235, 128, 128, 8
        $region36: #{tpu_custom_call.1} parent=31 // pred_fallthru
          _
      $region32: #{tpu_custom_call.1} parent=5 // pred_fallthru
        _
      %p253 = scmp.le.s32.totalorder 1, %s19
      %p254 = scmp.lt.s32.totalorder %s19, 3
      %p255 = pnand %p253, %p254
      %p256 = pneg %p255
      // Predicated region
      $region37: #{tpu_custom_call.1} parent=5 // pred_check
        _
      $region38: #{tpu_custom_call.1} parent=5 // pred_check_branch
        %258 = sbr.rel (%p255) target = $region40
      $region39: #{tpu_custom_call.1} parent=5 // pred_region
        %s259 = ssub.s32 %s19, 1
        %s260 = sand.u32 %s44, 1
        %s261 = scalar_lea.sflag [#allocation3], %s260
        %s262 = sand.u32 %s44, 1
        %s263 = smul.addr %s262, 16
        %s264 = scalar_lea.vmem [#allocation2], %s263
        // Predicated region
        $region41: #{tpu_custom_call.1} parent=39 // pred_check
          %p265 = pneg %p57
        $region42: #{tpu_custom_call.1} parent=39 // pred_check_branch
          %267 = sbr.rel (%p265) target = $region44
        $region43: #{tpu_custom_call.1} parent=39 // pred_region
          %269 = dma.done %s261, 256
        $region44: #{tpu_custom_call.1} parent=39 // pred_fallthru
          _
        // Predicated region
        $region45: #{tpu_custom_call.1} parent=39 // pred_check
          %p270 = pneg %p78
        $region46: #{tpu_custom_call.1} parent=39 // pred_check_branch
          %272 = sbr.rel (%p270) target = $region48
        $region47: #{tpu_custom_call.1} parent=39 // pred_region
          %274 = dma.done [#allocation6], 6144
        $region48: #{tpu_custom_call.1} parent=39 // pred_fallthru
          _
        // Predicated region
        $region49: #{tpu_custom_call.1} parent=39 // pred_check
          %p275 = pneg %p99
        $region50: #{tpu_custom_call.1} parent=39 // pred_check_branch
          %277 = sbr.rel (%p275) target = $region52
        $region51: #{tpu_custom_call.1} parent=39 // pred_region
          %279 = dma.done [#allocation6], 48
        $region52: #{tpu_custom_call.1} parent=39 // pred_fallthru
          _
        // Predicated region
        $region53: #{tpu_custom_call.1} parent=39 // pred_check
          %p280 = pneg %p120
        $region54: #{tpu_custom_call.1} parent=39 // pred_check_branch
          %282 = sbr.rel (%p280) target = $region56
        $region55: #{tpu_custom_call.1} parent=39 // pred_region
          %284 = dma.done [#allocation9], 2048
        $region56: #{tpu_custom_call.1} parent=39 // pred_fallthru
          _
        %s285 = sand.u32 %s44, 1
        %s286 = scalar_lea.sflag [#allocation3], %s285
        %s287 = sand.u32 %s44, 1
        %s288 = smul.addr %s287, 16
        %s289 = scalar_lea.vmem [#allocation2], %s288
        %p290 = pneg %p57
        %p291 = pneg %p54
        %p292 = pneg %p78
        %p293 = pneg %p75
        %p294 = pneg %p99
        %p295 = pneg %p96
        %p296 = pneg %p120
        %p297 = pneg %p117
        %p298 = pneg %p141
        %p299 = pneg %p138
        %p300 = pneg %p169
        %p301 = pneg %p166
        %s302 = sand.u32 %s156, 1
        %s303 = scalar_lea.sflag [#allocation4], %s302
        %s304 = sand.u32 %s156, 1
        %s305 = smul.addr %s304, 16
        %s306 = scalar_lea.vmem [#allocation10], %s305
        %s307 = smul.u32 2, %s29
        %v308 = vld [vmem:[%s264] sm:$0xff]
        %v309 = vld [vmem:[%s264 + $0x8] sm:$0xff]
        %v310 = vld [vmem:[#allocation5] sm:$0xff]
        %v311 = vld [vmem:[#allocation5 + $0x8] sm:$0xff]
        %v312 = vld [vmem:[#allocation5 + $0x10] sm:$0xff]
        %v313 = vld [vmem:[#allocation5 + $0x18] sm:$0xff]
        %v314 = vld [vmem:[#allocation5 + $0x20] sm:$0xff]
        %v315 = vld [vmem:[#allocation5 + $0x28] sm:$0xff]
        %v316 = vld [vmem:[#allocation5 + $0x30] sm:$0xff]
        %v317 = vld [vmem:[#allocation5 + $0x38] sm:$0xff]
        %v318 = vld [vmem:[#allocation5 + $0x40] sm:$0xff]
        %v319 = vld [vmem:[#allocation5 + $0x48] sm:$0xff]
        %v320 = vld [vmem:[#allocation5 + $0x50] sm:$0xff]
        %v321 = vld [vmem:[#allocation5 + $0x58] sm:$0xff]
        %v322 = vld [vmem:[#allocation5 + $0x60] sm:$0xff]
        %v323 = vld [vmem:[#allocation5 + $0x68] sm:$0xff]
        %v324 = vld [vmem:[#allocation5 + $0x70] sm:$0xff]
        %v325 = vld [vmem:[#allocation5 + $0x78] sm:$0xff]
        %v326 = vld [vmem:[#allocation5 + $0x80] sm:$0xff]
        %v327 = vld [vmem:[#allocation5 + $0x88] sm:$0xff]
        %v328 = vld [vmem:[#allocation5 + $0x90] sm:$0xff]
        %v329 = vld [vmem:[#allocation5 + $0x98] sm:$0xff]
        %v330 = vld [vmem:[#allocation5 + $0xa0] sm:$0xff]
        %v331 = vld [vmem:[#allocation5 + $0xa8] sm:$0xff]
        %v332 = vld [vmem:[#allocation5 + $0xb0] sm:$0xff]
        %v333 = vld [vmem:[#allocation5 + $0xb8] sm:$0xff]
        %v334 = vld [vmem:[#allocation5 + $0xc0] sm:$0xff]
        %v335 = vld [vmem:[#allocation5 + $0xc8] sm:$0xff]
        %v336 = vld [vmem:[#allocation5 + $0xd0] sm:$0xff]
        %v337 = vld [vmem:[#allocation5 + $0xd8] sm:$0xff]
        %v338 = vld [vmem:[#allocation5 + $0xe0] sm:$0xff]
        %v339 = vld [vmem:[#allocation5 + $0xe8] sm:$0xff]
        %v340 = vld [vmem:[#allocation5 + $0xf0] sm:$0xff]
        %v341 = vld [vmem:[#allocation5 + $0xf8] sm:$0xff]
        %v342 = vld [vmem:[#allocation5 + $0x100] sm:$0xff]
        %v343 = vld [vmem:[#allocation5 + $0x108] sm:$0xff]
        %v344 = vld [vmem:[#allocation5 + $0x110] sm:$0xff]
        %v345 = vld [vmem:[#allocation5 + $0x118] sm:$0xff]
        %v346 = vld [vmem:[#allocation5 + $0x120] sm:$0xff]
        %v347 = vld [vmem:[#allocation5 + $0x128] sm:$0xff]
        %v348 = vld [vmem:[#allocation5 + $0x130] sm:$0xff]
        %v349 = vld [vmem:[#allocation5 + $0x138] sm:$0xff]
        %v350 = vld [vmem:[#allocation5 + $0x140] sm:$0xff]
        %v351 = vld [vmem:[#allocation5 + $0x148] sm:$0xff]
        %v352 = vld [vmem:[#allocation5 + $0x150] sm:$0xff]
        %v353 = vld [vmem:[#allocation5 + $0x158] sm:$0xff]
        %v354 = vld [vmem:[#allocation5 + $0x160] sm:$0xff]
        %v355 = vld [vmem:[#allocation5 + $0x168] sm:$0xff]
        %v356 = vld [vmem:[#allocation5 + $0x170] sm:$0xff]
        %v357 = vld [vmem:[#allocation5 + $0x178] sm:$0xff]
        %v358 = vld [vmem:[#allocation7] sm:$0x7]
        %v360 = vperm.slane %v358, 0
        %v361 = vperm.slane %v358, 1
        %v362 = vperm.slane %v358, 2
        %366 = vmatpush.msra.mxu0 %v355
        %367 = vmatpush.msra.mxu0 %v352
        %368 = vmatpush.msra.mxu0 %v349
        %369 = vmatpush.msra.mxu0 %v346
        %370 = vmatpush.msra.mxu0 %v343
        %371 = vmatpush.msra.mxu0 %v340
        %372 = vmatpush.msra.mxu0 %v337
        %373 = vmatpush.msra.mxu0 %v334
        %374 = vmatpush.msra.mxu0 %v331
        %375 = vmatpush.msra.mxu0 %v328
        %376 = vmatpush.msra.mxu0 %v325
        %377 = vmatpush.msra.mxu0 %v322
        %378 = vmatpush.msra.mxu0 %v319
        %379 = vmatpush.msra.mxu0 %v316
        %380 = vmatpush.msra.mxu0 %v313
        %381 = vmatpush.msra.mxu0 %v310
        %382 = vmatmul.f32.gmra.mxu0 %v308
        %v383 = vpop.f32.mrf.mxu0
        %v384 = vadd.f32 %v360, %v383
        %385 = vmatmul.f32.gmra.mxu0 %v309
        %v386 = vpop.f32.mrf.mxu0
        %v387 = vadd.f32 %v360, %v386
        %388 = vdwg.mxu0
        %389 = vmatpush.msra.mxu0 %v356
        %390 = vmatpush.msra.mxu0 %v353
        %391 = vmatpush.msra.mxu0 %v350
        %392 = vmatpush.msra.mxu0 %v347
        %393 = vmatpush.msra.mxu0 %v344
        %394 = vmatpush.msra.mxu0 %v341
        %395 = vmatpush.msra.mxu0 %v338
        %396 = vmatpush.msra.mxu0 %v335
        %397 = vmatpush.msra.mxu0 %v332
        %398 = vmatpush.msra.mxu0 %v329
        %399 = vmatpush.msra.mxu0 %v326
        %400 = vmatpush.msra.mxu0 %v323
        %401 = vmatpush.msra.mxu0 %v320
        %402 = vmatpush.msra.mxu0 %v317
        %403 = vmatpush.msra.mxu0 %v314
        %404 = vmatpush.msra.mxu0 %v311
        %405 = vmatmul.f32.gmra.mxu0 %v308
        %v406 = vpop.f32.mrf.mxu0
        %v407 = vadd.f32 %v361, %v406
        %408 = vmatmul.f32.gmra.mxu0 %v309
        %v409 = vpop.f32.mrf.mxu0
        %v410 = vadd.f32 %v361, %v409
        %411 = vdwg.mxu0
        %412 = vmatpush.msra.mxu0 %v357
        %413 = vmatpush.msra.mxu0 %v354
        %414 = vmatpush.msra.mxu0 %v351
        %415 = vmatpush.msra.mxu0 %v348
        %416 = vmatpush.msra.mxu0 %v345
        %417 = vmatpush.msra.mxu0 %v342
        %418 = vmatpush.msra.mxu0 %v339
        %419 = vmatpush.msra.mxu0 %v336
        %420 = vmatpush.msra.mxu0 %v333
        %421 = vmatpush.msra.mxu0 %v330
        %422 = vmatpush.msra.mxu0 %v327
        %423 = vmatpush.msra.mxu0 %v324
        %424 = vmatpush.msra.mxu0 %v321
        %425 = vmatpush.msra.mxu0 %v318
        %426 = vmatpush.msra.mxu0 %v315
        %427 = vmatpush.msra.mxu0 %v312
        %428 = vmatmul.f32.gmra.mxu0 %v308
        %v429 = vpop.f32.mrf.mxu0
        %v430 = vadd.f32 %v362, %v429
        %431 = vmatmul.f32.gmra.mxu0 %v309
        %v432 = vpop.f32.mrf.mxu0
        %v433 = vadd.f32 %v362, %v432
        %434 = vdwg.mxu0
        %v435 = vmul.f32 %v384, 0.17677669
        %v436 = vmul.f32 %v387, 0.17677669
        %vm437 = vcmask 261120
        %v439 = vsel %vm437, %v435, 0
        %v442 = vsel %vm437, %v436, 0
        %v445 = vsel %vm437, %v407, 0
        %v448 = vsel %vm437, %v410, 0
        %450 = vmatpush.xpose.msra.mxu0 0.0
        %451 = vmatpush.xpose.msra.mxu0 0.0
        %452 = vmatpush.xpose.msra.mxu0 0.0
        %453 = vmatpush.xpose.msra.mxu0 0.0
        %454 = vmatpush.xpose.msra.mxu0 0.0
        %455 = vmatpush.xpose.msra.mxu0 0.0
        %456 = vmatpush.xpose.msra.mxu0 0.0
        %457 = vmatpush.xpose.msra.mxu0 0.0
        %458 = vmatpush.xpose.msra.mxu0 0.0
        %459 = vmatpush.xpose.msra.mxu0 0.0
        %460 = vmatpush.xpose.msra.mxu0 0.0
        %461 = vmatpush.xpose.msra.mxu0 0.0
        %462 = vmatpush.xpose.msra.mxu0 0.0
        %463 = vmatpush.xpose.msra.mxu0 0.0
        %464 = vmatpush.xpose.msra.mxu0 %v448
        %465 = vmatpush.xpose.msra.mxu0 %v445
        %466 = vmatmul.f32.gmra.mxu0 %v439
        %v467 = vpop.f32.mrf.mxu0
        %v468 = vadd.f32 0.0, %v467
        %469 = vmatmul.f32.gmra.mxu0 %v442
        %v470 = vpop.f32.mrf.mxu0
        %v471 = vadd.f32 0.0, %v470
        %472 = vdwg.mxu0
        %vm473 = vcmask 130048
        %v474 = vsel %vm473, %v468, -inf
        %475 = vmax.xlane.f32.xlu0 %v474
        %v476 = vpop.xlane.xlu0 %475
        %v477 = vsel %vm473, %v471, -inf
        %478 = vmax.xlane.f32.xlu0 %v477
        %v479 = vpop.xlane.xlu0 %478
        %v480 = vsub.f32 %v468, %v476
        %v481 = vsub.f32 %v471, %v479
        %v482 = vmul.f32 %v480, 1.442695
        %v483 = vpow.pop %v482
        %v484 = vmul.f32 %v481, 1.442695
        %v485 = vpow.pop %v484
        %v486 = vsel %vm473, %v483, 0.0
        %487 = vadd.xlane.f32.xlu0 %v486
        %v488 = vpop.xlane.xlu0 %487
        %v489 = vsel %vm473, %v485, 0.0
        %490 = vadd.xlane.f32.xlu0 %v489
        %v491 = vpop.xlane.xlu0 %490
        %v492 = vrcp.pop %v488
        %v493 = vrcp.pop %v491
        %v495 = vsel %vm473, %v483, 0
        %v498 = vsel %vm473, %v485, 0
        %500 = vmatpush.msra.mxu0 0.0
        %501 = vmatpush.msra.mxu0 0.0
        %502 = vmatpush.msra.mxu0 0.0
        %503 = vmatpush.msra.mxu0 0.0
        %504 = vmatpush.msra.mxu0 0.0
        %505 = vmatpush.msra.mxu0 0.0
        %506 = vmatpush.msra.mxu0 0.0
        %507 = vmatpush.msra.mxu0 0.0
        %508 = vmatpush.msra.mxu0 0.0
        %509 = vmatpush.msra.mxu0 0.0
        %510 = vmatpush.msra.mxu0 0.0
        %511 = vmatpush.msra.mxu0 0.0
        %512 = vmatpush.msra.mxu0 0.0
        %513 = vmatpush.msra.mxu0 0.0
        %514 = vmatpush.msra.mxu0 %v433
        %515 = vmatpush.msra.mxu0 %v430
        %516 = vmatmul.f32.gmra.mxu0 %v495
        %v517 = vpop.f32.mrf.mxu0
        %v518 = vadd.f32 0.0, %v517
        %519 = vmatmul.f32.gmra.mxu0 %v498
        %v520 = vpop.f32.mrf.mxu0
        %v521 = vadd.f32 0.0, %v520
        %522 = vdwg.mxu0
        %v523 = vmul.f32 %v518, %v492
        %v524 = vmul.f32 %v521, %v493
        %v525 = vld [vmem:[#allocation8] sm:$0xff]
        %v526 = vld [vmem:[#allocation8 + $0x8] sm:$0xff]
        %v527 = vld [vmem:[#allocation8 + $0x10] sm:$0xff]
        %v528 = vld [vmem:[#allocation8 + $0x18] sm:$0xff]
        %529 = vrot.lane.b32.xlu0 %v435, 96
        %v530 = vpop.permute.xlu0 %529
        %531 = vrot.lane.b32.xlu0 %v436, 96
        %v532 = vpop.permute.xlu0 %531
        %533 = vrot.lane.b32.xlu0 %v407, 96
        %v534 = vpop.permute.xlu0 %533
        %535 = vrot.lane.b32.xlu0 %v410, 96
        %v536 = vpop.permute.xlu0 %535
        %v537 = vsel %vm437, %v530, 0
        %v539 = vsel %vm437, %v532, 0
        %v541 = vsel %vm437, %v534, 0
        %v543 = vsel %vm437, %v536, 0
        %545 = vmatpush.xpose.msra.mxu0 0.0
        %546 = vmatpush.xpose.msra.mxu0 0.0
        %547 = vmatpush.xpose.msra.mxu0 0.0
        %548 = vmatpush.xpose.msra.mxu0 0.0
        %549 = vmatpush.xpose.msra.mxu0 0.0
        %550 = vmatpush.xpose.msra.mxu0 0.0
        %551 = vmatpush.xpose.msra.mxu0 0.0
        %552 = vmatpush.xpose.msra.mxu0 0.0
        %553 = vmatpush.xpose.msra.mxu0 0.0
        %554 = vmatpush.xpose.msra.mxu0 0.0
        %555 = vmatpush.xpose.msra.mxu0 0.0
        %556 = vmatpush.xpose.msra.mxu0 0.0
        %557 = vmatpush.xpose.msra.mxu0 0.0
        %558 = vmatpush.xpose.msra.mxu0 0.0
        %559 = vmatpush.xpose.msra.mxu0 %v543
        %560 = vmatpush.xpose.msra.mxu0 %v541
        %561 = vmatmul.f32.gmra.mxu0 %v537
        %v562 = vpop.f32.mrf.mxu0
        %v563 = vadd.f32 0.0, %v562
        %564 = vmatmul.f32.gmra.mxu0 %v539
        %v565 = vpop.f32.mrf.mxu0
        %v566 = vadd.f32 0.0, %v565
        %567 = vdwg.mxu0
        %v568 = vsel %vm473, %v563, -inf
        %569 = vmax.xlane.f32.xlu0 %v568
        %v570 = vpop.xlane.xlu0 %569
        %v571 = vsel %vm473, %v566, -inf
        %572 = vmax.xlane.f32.xlu0 %v571
        %v573 = vpop.xlane.xlu0 %572
        %v574 = vsub.f32 %v563, %v570
        %v575 = vsub.f32 %v566, %v573
        %v576 = vmul.f32 %v574, 1.442695
        %v577 = vpow.pop %v576
        %v578 = vmul.f32 %v575, 1.442695
        %v579 = vpow.pop %v578
        %v580 = vsel %vm473, %v577, 0.0
        %581 = vadd.xlane.f32.xlu0 %v580
        %v582 = vpop.xlane.xlu0 %581
        %v583 = vsel %vm473, %v579, 0.0
        %584 = vadd.xlane.f32.xlu0 %v583
        %v585 = vpop.xlane.xlu0 %584
        %v586 = vrcp.pop %v582
        %v587 = vrcp.pop %v585
        %590 = vrot.lane.b32.xlu0 %v430, 96
        %v591 = vpop.permute.xlu0 %590
        %592 = vrot.lane.b32.xlu0 %v433, 96
        %v593 = vpop.permute.xlu0 %592
        %v597 = vsel %vm473, %v577, 0
        %v600 = vsel %vm473, %v579, 0
        %602 = vmatpush.msra.mxu0 0.0
        %603 = vmatpush.msra.mxu0 0.0
        %604 = vmatpush.msra.mxu0 0.0
        %605 = vmatpush.msra.mxu0 0.0
        %606 = vmatpush.msra.mxu0 0.0
        %607 = vmatpush.msra.mxu0 0.0
        %608 = vmatpush.msra.mxu0 0.0
        %609 = vmatpush.msra.mxu0 0.0
        %610 = vmatpush.msra.mxu0 0.0
        %611 = vmatpush.msra.mxu0 0.0
        %612 = vmatpush.msra.mxu0 0.0
        %613 = vmatpush.msra.mxu0 0.0
        %614 = vmatpush.msra.mxu0 0.0
        %615 = vmatpush.msra.mxu0 0.0
        %616 = vmatpush.msra.mxu0 %v593
        %617 = vmatpush.msra.mxu0 %v591
        %618 = vmatmul.f32.gmra.mxu0 %v597
        %v619 = vpop.f32.mrf.mxu0
        %v620 = vadd.f32 0.0, %v619
        %621 = vmatmul.f32.gmra.mxu0 %v600
        %v622 = vpop.f32.mrf.mxu0
        %v623 = vadd.f32 0.0, %v622
        %624 = vdwg.mxu0
        %v625 = vmul.f32 %v620, %v586
        %v626 = vmul.f32 %v623, %v587
        %v627 = vld [vmem:[#allocation8 + $0x20] sm:$0xff]
        %v628 = vld [vmem:[#allocation8 + $0x28] sm:$0xff]
        %v629 = vld [vmem:[#allocation8 + $0x30] sm:$0xff]
        %v630 = vld [vmem:[#allocation8 + $0x38] sm:$0xff]
        %v632 = vsel %vm437, %v625, 0
        %v635 = vsel %vm437, %v626, 0
        %637 = vmatpush.msra.mxu0 0.0
        %638 = vmatpush.msra.mxu0 0.0
        %639 = vmatpush.msra.mxu0 0.0
        %640 = vmatpush.msra.mxu0 0.0
        %641 = vmatpush.msra.mxu0 0.0
        %642 = vmatpush.msra.mxu0 0.0
        %643 = vmatpush.msra.mxu0 0.0
        %644 = vmatpush.msra.mxu0 0.0
        %645 = vmatpush.msra.mxu0 0.0
        %646 = vmatpush.msra.mxu0 0.0
        %647 = vmatpush.msra.mxu0 0.0
        %648 = vmatpush.msra.mxu0 0.0
        %649 = vmatpush.msra.mxu0 %v630
        %650 = vmatpush.msra.mxu0 %v629
        %651 = vmatpush.msra.mxu0 %v628
        %652 = vmatpush.msra.mxu0 %v627
        %653 = vmatmul.f32.gmra.mxu0 %v632
        %v654 = vpop.f32.mrf.mxu0
        %v655 = vadd.f32 0.0, %v654
        %656 = vmatmul.f32.gmra.mxu0 %v635
        %v657 = vpop.f32.mrf.mxu0
        %v658 = vadd.f32 0.0, %v657
        %659 = vdwg.mxu0
        %v661 = vsel %vm437, %v523, 0
        %v664 = vsel %vm437, %v524, 0
        %666 = vmatpush.msra.mxu0 0.0
        %667 = vmatpush.msra.mxu0 0.0
        %668 = vmatpush.msra.mxu0 0.0
        %669 = vmatpush.msra.mxu0 0.0
        %670 = vmatpush.msra.mxu0 0.0
        %671 = vmatpush.msra.mxu0 0.0
        %672 = vmatpush.msra.mxu0 0.0
        %673 = vmatpush.msra.mxu0 0.0
        %674 = vmatpush.msra.mxu0 0.0
        %675 = vmatpush.msra.mxu0 0.0
        %676 = vmatpush.msra.mxu0 0.0
        %677 = vmatpush.msra.mxu0 0.0
        %678 = vmatpush.msra.mxu0 %v528
        %679 = vmatpush.msra.mxu0 %v527
        %680 = vmatpush.msra.mxu0 %v526
        %681 = vmatpush.msra.mxu0 %v525
        %682 = vmatmul.f32.gmra.mxu0 %v661
        %v683 = vpop.f32.mrf.mxu0
        %v684 = vadd.f32 %v655, %v683
        %685 = vmatmul.f32.gmra.mxu0 %v664
        %v686 = vpop.f32.mrf.mxu0
        %v687 = vadd.f32 %v658, %v686
        %688 = vdwg.mxu0
        %689 = vrot.lane.b32.xlu0 %v435, 64
        %v690 = vpop.permute.xlu0 %689
        %691 = vrot.lane.b32.xlu0 %v436, 64
        %v692 = vpop.permute.xlu0 %691
        %693 = vrot.lane.b32.xlu0 %v407, 64
        %v694 = vpop.permute.xlu0 %693
        %695 = vrot.lane.b32.xlu0 %v410, 64
        %v696 = vpop.permute.xlu0 %695
        %v697 = vsel %vm437, %v690, 0
        %v699 = vsel %vm437, %v692, 0
        %v701 = vsel %vm437, %v694, 0
        %v703 = vsel %vm437, %v696, 0
        %705 = vmatpush.xpose.msra.mxu0 0.0
        %706 = vmatpush.xpose.msra.mxu0 0.0
        %707 = vmatpush.xpose.msra.mxu0 0.0
        %708 = vmatpush.xpose.msra.mxu0 0.0
        %709 = vmatpush.xpose.msra.mxu0 0.0
        %710 = vmatpush.xpose.msra.mxu0 0.0
        %711 = vmatpush.xpose.msra.mxu0 0.0
        %712 = vmatpush.xpose.msra.mxu0 0.0
        %713 = vmatpush.xpose.msra.mxu0 0.0
        %714 = vmatpush.xpose.msra.mxu0 0.0
        %715 = vmatpush.xpose.msra.mxu0 0.0
        %716 = vmatpush.xpose.msra.mxu0 0.0
        %717 = vmatpush.xpose.msra.mxu0 0.0
        %718 = vmatpush.xpose.msra.mxu0 0.0
        %719 = vmatpush.xpose.msra.mxu0 %v703
        %720 = vmatpush.xpose.msra.mxu0 %v701
        %721 = vmatmul.f32.gmra.mxu0 %v697
        %v722 = vpop.f32.mrf.mxu0
        %v723 = vadd.f32 0.0, %v722
        %724 = vmatmul.f32.gmra.mxu0 %v699
        %v725 = vpop.f32.mrf.mxu0
        %v726 = vadd.f32 0.0, %v725
        %727 = vdwg.mxu0
        %v728 = vsel %vm473, %v723, -inf
        %729 = vmax.xlane.f32.xlu0 %v728
        %v730 = vpop.xlane.xlu0 %729
        %v731 = vsel %vm473, %v726, -inf
        %732 = vmax.xlane.f32.xlu0 %v731
        %v733 = vpop.xlane.xlu0 %732
        %v734 = vsub.f32 %v723, %v730
        %v735 = vsub.f32 %v726, %v733
        %v736 = vmul.f32 %v734, 1.442695
        %v737 = vpow.pop %v736
        %v738 = vmul.f32 %v735, 1.442695
        %v739 = vpow.pop %v738
        %v740 = vsel %vm473, %v737, 0.0
        %741 = vadd.xlane.f32.xlu0 %v740
        %v742 = vpop.xlane.xlu0 %741
        %v743 = vsel %vm473, %v739, 0.0
        %744 = vadd.xlane.f32.xlu0 %v743
        %v745 = vpop.xlane.xlu0 %744
        %v746 = vrcp.pop %v742
        %v747 = vrcp.pop %v745
        %748 = vrot.lane.b32.xlu0 %v430, 64
        %v749 = vpop.permute.xlu0 %748
        %750 = vrot.lane.b32.xlu0 %v433, 64
        %v751 = vpop.permute.xlu0 %750
        %v755 = vsel %vm473, %v737, 0
        %v758 = vsel %vm473, %v739, 0
        %760 = vmatpush.msra.mxu0 0.0
        %761 = vmatpush.msra.mxu0 0.0
        %762 = vmatpush.msra.mxu0 0.0
        %763 = vmatpush.msra.mxu0 0.0
        %764 = vmatpush.msra.mxu0 0.0
        %765 = vmatpush.msra.mxu0 0.0
        %766 = vmatpush.msra.mxu0 0.0
        %767 = vmatpush.msra.mxu0 0.0
        %768 = vmatpush.msra.mxu0 0.0
        %769 = vmatpush.msra.mxu0 0.0
        %770 = vmatpush.msra.mxu0 0.0
        %771 = vmatpush.msra.mxu0 0.0
        %772 = vmatpush.msra.mxu0 0.0
        %773 = vmatpush.msra.mxu0 0.0
        %774 = vmatpush.msra.mxu0 %v751
        %775 = vmatpush.msra.mxu0 %v749
        %776 = vmatmul.f32.gmra.mxu0 %v755
        %v777 = vpop.f32.mrf.mxu0
        %v778 = vadd.f32 0.0, %v777
        %779 = vmatmul.f32.gmra.mxu0 %v758
        %v780 = vpop.f32.mrf.mxu0
        %v781 = vadd.f32 0.0, %v780
        %782 = vdwg.mxu0
        %v783 = vmul.f32 %v778, %v746
        %v784 = vmul.f32 %v781, %v747
        %v785 = vld [vmem:[#allocation8 + $0x40] sm:$0xff]
        %v786 = vld [vmem:[#allocation8 + $0x48] sm:$0xff]
        %v787 = vld [vmem:[#allocation8 + $0x50] sm:$0xff]
        %v788 = vld [vmem:[#allocation8 + $0x58] sm:$0xff]
        %v790 = vsel %vm437, %v783, 0
        %v793 = vsel %vm437, %v784, 0
        %795 = vmatpush.msra.mxu0 0.0
        %796 = vmatpush.msra.mxu0 0.0
        %797 = vmatpush.msra.mxu0 0.0
        %798 = vmatpush.msra.mxu0 0.0
        %799 = vmatpush.msra.mxu0 0.0
        %800 = vmatpush.msra.mxu0 0.0
        %801 = vmatpush.msra.mxu0 0.0
        %802 = vmatpush.msra.mxu0 0.0
        %803 = vmatpush.msra.mxu0 0.0
        %804 = vmatpush.msra.mxu0 0.0
        %805 = vmatpush.msra.mxu0 0.0
        %806 = vmatpush.msra.mxu0 0.0
        %807 = vmatpush.msra.mxu0 %v788
        %808 = vmatpush.msra.mxu0 %v787
        %809 = vmatpush.msra.mxu0 %v786
        %810 = vmatpush.msra.mxu0 %v785
        %811 = vmatmul.f32.gmra.mxu0 %v790
        %v812 = vpop.f32.mrf.mxu0
        %v813 = vadd.f32 0.0, %v812
        %814 = vmatmul.f32.gmra.mxu0 %v793
        %v815 = vpop.f32.mrf.mxu0
        %v816 = vadd.f32 0.0, %v815
        %817 = vdwg.mxu0
        %v818 = vadd.f32 %v684, %v813
        %v819 = vadd.f32 %v687, %v816
        %820 = vrot.lane.b32.xlu0 %v435, 32
        %v821 = vpop.permute.xlu0 %820
        %822 = vrot.lane.b32.xlu0 %v436, 32
        %v823 = vpop.permute.xlu0 %822
        %824 = vrot.lane.b32.xlu0 %v407, 32
        %v825 = vpop.permute.xlu0 %824
        %826 = vrot.lane.b32.xlu0 %v410, 32
        %v827 = vpop.permute.xlu0 %826
        %v828 = vsel %vm437, %v821, 0
        %v830 = vsel %vm437, %v823, 0
        %v832 = vsel %vm437, %v825, 0
        %v834 = vsel %vm437, %v827, 0
        %836 = vmatpush.xpose.msra.mxu0 0.0
        %837 = vmatpush.xpose.msra.mxu0 0.0
        %838 = vmatpush.xpose.msra.mxu0 0.0
        %839 = vmatpush.xpose.msra.mxu0 0.0
        %840 = vmatpush.xpose.msra.mxu0 0.0
        %841 = vmatpush.xpose.msra.mxu0 0.0
        %842 = vmatpush.xpose.msra.mxu0 0.0
        %843 = vmatpush.xpose.msra.mxu0 0.0
        %844 = vmatpush.xpose.msra.mxu0 0.0
        %845 = vmatpush.xpose.msra.mxu0 0.0
        %846 = vmatpush.xpose.msra.mxu0 0.0
        %847 = vmatpush.xpose.msra.mxu0 0.0
        %848 = vmatpush.xpose.msra.mxu0 0.0
        %849 = vmatpush.xpose.msra.mxu0 0.0
        %850 = vmatpush.xpose.msra.mxu0 %v834
        %851 = vmatpush.xpose.msra.mxu0 %v832
        %852 = vmatmul.f32.gmra.mxu0 %v828
        %v853 = vpop.f32.mrf.mxu0
        %v854 = vadd.f32 0.0, %v853
        %855 = vmatmul.f32.gmra.mxu0 %v830
        %v856 = vpop.f32.mrf.mxu0
        %v857 = vadd.f32 0.0, %v856
        %858 = vdwg.mxu0
        %v859 = vsel %vm473, %v854, -inf
        %860 = vmax.xlane.f32.xlu0 %v859
        %v861 = vpop.xlane.xlu0 %860
        %v862 = vsel %vm473, %v857, -inf
        %863 = vmax.xlane.f32.xlu0 %v862
        %v864 = vpop.xlane.xlu0 %863
        %v865 = vsub.f32 %v854, %v861
        %v866 = vsub.f32 %v857, %v864
        %v867 = vmul.f32 %v865, 1.442695
        %v868 = vpow.pop %v867
        %v869 = vmul.f32 %v866, 1.442695
        %v870 = vpow.pop %v869
        %v871 = vsel %vm473, %v868, 0.0
        %872 = vadd.xlane.f32.xlu0 %v871
        %v873 = vpop.xlane.xlu0 %872
        %v874 = vsel %vm473, %v870, 0.0
        %875 = vadd.xlane.f32.xlu0 %v874
        %v876 = vpop.xlane.xlu0 %875
        %v877 = vrcp.pop %v873
        %v878 = vrcp.pop %v876
        %879 = vrot.lane.b32.xlu0 %v430, 32
        %v880 = vpop.permute.xlu0 %879
        %881 = vrot.lane.b32.xlu0 %v433, 32
        %v882 = vpop.permute.xlu0 %881
        %v886 = vsel %vm473, %v868, 0
        %v889 = vsel %vm473, %v870, 0
        %891 = vmatpush.msra.mxu0 0.0
        %892 = vmatpush.msra.mxu0 0.0
        %893 = vmatpush.msra.mxu0 0.0
        %894 = vmatpush.msra.mxu0 0.0
        %895 = vmatpush.msra.mxu0 0.0
        %896 = vmatpush.msra.mxu0 0.0
        %897 = vmatpush.msra.mxu0 0.0
        %898 = vmatpush.msra.mxu0 0.0
        %899 = vmatpush.msra.mxu0 0.0
        %900 = vmatpush.msra.mxu0 0.0
        %901 = vmatpush.msra.mxu0 0.0
        %902 = vmatpush.msra.mxu0 0.0
        %903 = vmatpush.msra.mxu0 0.0
        %904 = vmatpush.msra.mxu0 0.0
        %905 = vmatpush.msra.mxu0 %v882
        %906 = vmatpush.msra.mxu0 %v880
        %907 = vmatmul.f32.gmra.mxu0 %v886
        %v908 = vpop.f32.mrf.mxu0
        %v909 = vadd.f32 0.0, %v908
        %910 = vmatmul.f32.gmra.mxu0 %v889
        %v911 = vpop.f32.mrf.mxu0
        %v912 = vadd.f32 0.0, %v911
        %913 = vdwg.mxu0
        %v914 = vmul.f32 %v909, %v877
        %v915 = vmul.f32 %v912, %v878
        %v916 = vld [vmem:[#allocation8 + $0x60] sm:$0xff]
        %v917 = vld [vmem:[#allocation8 + $0x68] sm:$0xff]
        %v918 = vld [vmem:[#allocation8 + $0x70] sm:$0xff]
        %v919 = vld [vmem:[#allocation8 + $0x78] sm:$0xff]
        %v921 = vsel %vm437, %v914, 0
        %v924 = vsel %vm437, %v915, 0
        %926 = vmatpush.msra.mxu0 0.0
        %927 = vmatpush.msra.mxu0 0.0
        %928 = vmatpush.msra.mxu0 0.0
        %929 = vmatpush.msra.mxu0 0.0
        %930 = vmatpush.msra.mxu0 0.0
        %931 = vmatpush.msra.mxu0 0.0
        %932 = vmatpush.msra.mxu0 0.0
        %933 = vmatpush.msra.mxu0 0.0
        %934 = vmatpush.msra.mxu0 0.0
        %935 = vmatpush.msra.mxu0 0.0
        %936 = vmatpush.msra.mxu0 0.0
        %937 = vmatpush.msra.mxu0 0.0
        %938 = vmatpush.msra.mxu0 %v919
        %939 = vmatpush.msra.mxu0 %v918
        %940 = vmatpush.msra.mxu0 %v917
        %941 = vmatpush.msra.mxu0 %v916
        %942 = vmatmul.f32.gmra.mxu0 %v921
        %v943 = vpop.f32.mrf.mxu0
        %v944 = vadd.f32 0.0, %v943
        %945 = vmatmul.f32.gmra.mxu0 %v924
        %v946 = vpop.f32.mrf.mxu0
        %v947 = vadd.f32 0.0, %v946
        %948 = vdwg.mxu0
        %v949 = vadd.f32 %v818, %v944
        %v950 = vadd.f32 %v819, %v947
        %v951 = vld [vmem:[%s4] sm:$0x1]
        %v953 = vperm.slane %v951, 0
        %v955 = vadd.f32 %v949, %v953
        %v956 = vadd.f32 %v950, %v953
        %957 = vst [vmem:[%s306] sm:$0xff] %v955
        %958 = vst [vmem:[%s306 + $0x8] sm:$0xff] %v956
        %s959 = sand.u32 %s156, 1
        %s960 = scalar_lea.sflag [#allocation4], %s959
        %s961 = sand.u32 %s156, 1
        %s962 = smul.addr %s961, 16
        %s963 = scalar_lea.vmem [#allocation10], %s962
        // Predicated region
        $region57: #{tpu_custom_call.1} parent=39 // pred_check
          %p964 = pneg %p166
        $region58: #{tpu_custom_call.1} parent=39 // pred_check_branch
          %966 = sbr.rel (%p964) target = $region60
        $region59: #{tpu_custom_call.1} parent=39 // pred_region
          %s967 = smul.u32 2, %s29
          %969 = vsyncadd %s960, 0
          %s970 = smul.addr %s28, 2
          %s971 = sadd.s32 %s967, %s970
          %s972 = smul.addr %s971, 8
          %s973 = scalar_lea.hbm %s5, %s972
          %s974 = sshll.u32 %s963, 4
          %s975 = int_to_ptr.vmem [resolvable:$true] %s974
          %s976 = sshll.u32 %s973, 4
          %s977 = int_to_ptr.hbm [resolvable:$true] %s976
          %982 = dma.vmem_to_hbm [thread:$0]  %s975, 256, %s977, %s960, 128, 128, 8
        $region60: #{tpu_custom_call.1} parent=39 // pred_fallthru
          _
      $region40: #{tpu_custom_call.1} parent=5 // pred_fallthru
        _
      %p983 = scmp.le.s32.totalorder 2, %s19
      // Predicated region
      $region61: #{tpu_custom_call.1} parent=5 // pred_check
        %p984 = pneg %p983
      $region62: #{tpu_custom_call.1} parent=5 // pred_check_branch
        %986 = sbr.rel (%p984) target = $region64
      $region63: #{tpu_custom_call.1} parent=5 // pred_region
        %s987 = ssub.s32 %s19, 2
        // Predicated region
        $region65: #{tpu_custom_call.1} parent=63 // pred_check
          %p988 = pneg %p172
        $region66: #{tpu_custom_call.1} parent=63 // pred_check_branch
          %990 = sbr.rel (%p988) target = $region68
        $region67: #{tpu_custom_call.1} parent=63 // pred_region
          %s991 = sand.u32 %s157, 1
          %s992 = scalar_lea.sflag [#allocation4], %s991
          %s993 = sand.u32 %s157, 1
          %s994 = smul.addr %s993, 16
          %s995 = scalar_lea.vmem [#allocation10], %s994
          %997 = dma.done %s992, 256
        $region68: #{tpu_custom_call.1} parent=63 // pred_fallthru
          _
      $region64: #{tpu_custom_call.1} parent=5 // pred_fallthru
        _
    $region6: #{tpu_custom_call.1} parent=1 // loop_footer
      %s23 = sadd.s32 1, %s19
    $region7: #{tpu_custom_call.1} parent=1 // loop_footer_branch
      %18 = sbr.rel target = $region3
    $region8: #{tpu_custom_call.1} parent=1 // loop_exit
      _
    %998 = vsyncpa [#allocation3], 1
    %s999 = scalar_lea.sflag [#allocation3], 1
    %1000 = vsyncpa %s999, 1
    %1001 = vsyncpa [#allocation6], 1
    %1002 = vsyncpa [#allocation9], 1
    %1003 = vsyncpa [#allocation4], 1
    %s1004 = scalar_lea.sflag [#allocation4], 1
    %1005 = vsyncpa %s1004, 1

</llo_original>
